<compile_context>
chip_gen: v6e
topology: v6e:2x2x1
jax: 0.10.0
libtpu: 0.0.40
codegen_flags: <defaults>
</compile_context>

<pallas_src>
import functools
import math

import numpy as np
import jax
import jax.numpy as jnp
from jax.experimental import pallas as pl
from jax.experimental.pallas import tpu as pltpu

_HALF_LOG_2PI = 0.5 * math.log(2.0 * math.pi)


def _gauss_vector_kernel(*refs, rv_dim, local_size, transform_means, learn_sigma, has_marg,
                         min_mean, max_mean, min_sigma, max_sigma):
    # Ref order: bx [L*R, L*G*R], fold [L*G*R, G] (entries = -0.5), x [TB, L*R],
    #            means [TB, L*G*R], (sigmas [TB, L*G*R]), (lmat [L, L*G*R], marg [TB, L]), out [TB, G]
    it = iter(refs)
    bx_ref = next(it)
    fold_ref = next(it)
    x_ref = next(it)
    mean_ref = next(it)
    sigma_ref = next(it) if learn_sigma else None
    if has_marg:
        lmat_ref = next(it)
        marg_ref = next(it)
    o_ref = next(it)

    f32 = jnp.float32

    # Broadcast x[b, l, r] across the G mixture components along the lane axis
    # (lane k = l*G*R + g*R + r) with a constant 0/1 matmul on the idle MXU.
    x_t = jnp.dot(x_ref[...].astype(f32), bx_ref[...],
                  preferred_element_type=f32)                       # [TB, L*G*R]

    raw_mu = mean_ref[...].astype(f32)                              # [TB, L*G*R]
    if transform_means:
        # sigmoid(x)*(max-min)+min == 0.5*(max-min)*tanh(0.5*x) + 0.5*(max+min)  (1 EUP push)
        mu = (0.5 * (max_mean - min_mean)) * jnp.tanh(0.5 * raw_mu) + 0.5 * (max_mean + min_mean)
    else:
        mu = raw_mu

    diff = x_t - mu

    # "Raw" log-pdf WITHOUT the -0.5 factor and WITHOUT the log(2*pi) term; both are applied
    # later (the -0.5 lives in the fold matrix, log(2*pi) after the reduction).
    if learn_sigma:
        raw_sig = sigma_ref[...].astype(f32)
        sigma = (0.5 * (min_sigma + max_sigma)
                 + (0.5 * (max_sigma - min_sigma)) * jnp.tanh(0.5 * raw_sig))
        inv_sigma = pl.reciprocal(sigma, approx=True)
        lp_raw = diff * diff * inv_sigma + jnp.log(sigma)
    else:
        lp_raw = diff * diff                                        # sigma == 1.0, log(sigma) == 0

    if has_marg:
        w = 1.0 - jnp.clip(marg_ref[...].astype(f32), 0.0, 1.0)     # [TB, L]
        w_lane = jnp.dot(w, lmat_ref[...], preferred_element_type=f32)   # [TB, L*G*R]
        lp_raw = lp_raw * w_lane
        # hoisted -0.5*log(2*pi): each (l, r) element carries weight w_l
        corr = (-_HALF_LOG_2PI * rv_dim) * jnp.sum(w, axis=-1, keepdims=True)   # [TB, 1]
    else:
        corr = jnp.float32(-_HALF_LOG_2PI * rv_dim * local_size)

    # L-sum + (g*R + r -> g) fold in one constant matmul; fold entries are -0.5.
    out = jnp.dot(lp_raw, fold_ref[...], preferred_element_type=f32) + corr     # [TB, G]
    o_ref[...] = out.astype(o_ref.dtype)


def gauss_vector_forward(inputs, scope, raw_means, raw_sigmas=None, marginalized=None, *,
                         num_gauss, rv_dim=2,
                         gauss_min_mean=None, gauss_max_mean=None,
                         gauss_min_sigma=1.0, gauss_max_sigma=1.0,
                         batch_tile=None):
    """GaussVector.forward.

    inputs:       [B, num_dims, rv_dim]  (or [B, num_dims] when rv_dim == 1)
    scope:        static iterable of RV indices (the region)
    raw_means:    [B, L, num_gauss * rv_dim]  raw leaf params from the conditional provider
    raw_sigmas:   [B, L, num_gauss * rv_dim]  (required iff gauss_min_sigma < gauss_max_sigma)
    marginalized: [B, num_dims] or None
    returns:      [B, num_gauss] log-probabilities (float32)
    """
    scope = tuple(sorted(int(s) for s in scope))
    scope_idx = np.asarray(scope)
    L = len(scope)
    B = int(inputs.shape[0])
    G, R = int(num_gauss), int(rv_dim)
    GR = G * R
    LGR = L * GR

    # Static scope gather (glue, same as inputs[:, self.scope]) + contiguous flatten (bitcast).
    local_x = inputs[:, scope_idx]
    if R == 1 and local_x.ndim == 2:
        local_x = local_x[..., None]
    x_flat = local_x.reshape(B, L * R)                   # [B, L*R], storage dtype preserved

    assert raw_means.shape == (B, L, GR), raw_means.shape
    means_flat = raw_means.reshape(B, LGR)               # contiguous reshape, no copy, no astype

    transform_means = bool(gauss_max_mean)
    if transform_means:
        assert gauss_min_mean is not None
    learn_sigma = float(gauss_min_sigma) < float(gauss_max_sigma)
    if learn_sigma:
        assert raw_sigmas is not None and raw_sigmas.shape == (B, L, GR)
        sigmas_flat = raw_sigmas.reshape(B, LGR)

    has_marg = marginalized is not None
    if has_marg:
        marg = marginalized[:, scope_idx]                 # [B, L]; 0..1 clamp happens in-kernel

    # ---- constant 0/1 matrices for the MXU broadcast / fold (resident VMEM inputs) ----
    bx_np = np.zeros((L * R, LGR), np.float32)            # x[b, l*R+r] -> lane l*GR + g*R + r
    fold_np = np.zeros((LGR, G), np.float32)               # lane l*GR + g*R + r -> g  (scaled -0.5)
    for l in range(L):
        for g in range(G):
            for r in range(R):
                k = l * GR + g * R + r
                bx_np[l * R + r, k] = 1.0
                fold_np[k, g] = -0.5
    bx = jnp.asarray(bx_np)
    fold = jnp.asarray(fold_np)
    if has_marg:
        lmat_np = np.zeros((L, LGR), np.float32)            # w[b, l] -> lanes l*GR .. (l+1)*GR
        for l in range(L):
            lmat_np[l, l * GR:(l + 1) * GR] = 1.0
        lmat = jnp.asarray(lmat_np)

    # ---- batch tile: double-buffered inputs + ~6 f32 temporaries per step, >=2 grid steps ----
    x_it = jnp.dtype(x_flat.dtype).itemsize
    m_it = jnp.dtype(means_flat.dtype).itemsize
    s_it = jnp.dtype(sigmas_flat.dtype).itemsize if learn_sigma else 0
    g_it = jnp.dtype(marg.dtype).itemsize if has_marg else 0

    per_row_in = (L * R * x_it + LGR * m_it
                  + (LGR * s_it if learn_sigma else 0)
                  + (L * g_it if has_marg else 0))
    row_bytes = 2 * per_row_in + 6 * LGR * 4 + 2 * G * 4

    if batch_tile is None:
        budget = 6 << 20                                   # safe under v5e's 16 MiB scoped default
        tb_cap = max(8, budget // max(row_bytes, 1))
        if B >= 16:
            tb_cap = min(tb_cap, B // 2)                   # >= 2 grid steps -> both v7x TCs busy
        tb = 0
        cand = (min(tb_cap, B) // 8) * 8
        while cand >= 8:                                   # largest multiple of 8 dividing B
            if B % cand == 0:
                tb = cand
                break
            cand -= 8
        if tb == 0:
            tb = B                                         # tiny / awkward B: whole-batch tile
    else:
        tb = int(batch_tile)
    assert B % tb == 0, (B, tb)
    grid = (B // tb,)

    const_bytes = (L * R * LGR + LGR * G + (L * LGR if has_marg else 0)) * 4
    vmem_est = 2 * tb * per_row_in + 2 * const_bytes + 6 * tb * LGR * 4 + 2 * tb * G * 4
    vmem_limit = int(min(48 << 20, max(16 << 20, 2 * vmem_est)))

    kernel = functools.partial(
        _gauss_vector_kernel,
        rv_dim=R, local_size=L,
        transform_means=transform_means, learn_sigma=learn_sigma, has_marg=has_marg,
        min_mean=float(gauss_min_mean) if transform_means else 0.0,
        max_mean=float(gauss_max_mean) if transform_means else 0.0,
        min_sigma=float(gauss_min_sigma), max_sigma=float(gauss_max_sigma))

    in_specs = [
        pl.BlockSpec((L * R, LGR), lambda i: (0, 0)),       # bx  (resident constant)
        pl.BlockSpec((LGR, G), lambda i: (0, 0)),           # fold (resident constant)
        pl.BlockSpec((tb, L * R), lambda i: (i, 0)),        # x
        pl.BlockSpec((tb, LGR), lambda i: (i, 0)),          # raw means
    ]
    operands = [bx, fold, x_flat, means_flat]
    if learn_sigma:
        in_specs.append(pl.BlockSpec((tb, LGR), lambda i: (i, 0)))
        operands.append(sigmas_flat)
    if has_marg:
        in_specs.append(pl.BlockSpec((L, LGR), lambda i: (0, 0)))   # lmat (resident constant)
        operands.append(lmat)
        in_specs.append(pl.BlockSpec((tb, L), lambda i: (i, 0)))    # marginalization mask
        operands.append(marg)

    return pl.pallas_call(
        kernel,
        out_shape=jax.ShapeDtypeStruct((B, G), jnp.float32),
        grid=grid,
        in_specs=in_specs,
        out_specs=pl.BlockSpec((tb, G), lambda i: (i, 0)),
        compiler_params=pltpu.CompilerParams(
            dimension_semantics=("parallel",),
            vmem_limit_bytes=vmem_limit),
    )(*operands)


if __name__ == "__main__":
    key = jax.random.PRNGKey(0)
    k1, k2, k3, k4 = jax.random.split(key, 4)

    # Small shapes consistent with a GaussVector leaf: batch=16, 12 RVs, rv_dim=2,
    # region (scope) of 8 RVs, 32 Gaussian components.
    B, num_dims, rv_dim = 16, 12, 2
    num_gauss = 32
    scope = (0, 2, 3, 5, 7, 8, 10, 11)
    L, GR = len(scope), num_gauss * rv_dim

    gauss_min_mean, gauss_max_mean = -2.0, 2.0
    gauss_min_sigma, gauss_max_sigma = 0.1, 1.0

    inputs = jax.random.normal(k1, (B, num_dims, rv_dim), dtype=jnp.float32)
    raw_means = jax.random.normal(k2, (B, L, GR), dtype=jnp.float32)
    raw_sigmas = jax.random.normal(k3, (B, L, GR), dtype=jnp.float32)
    marginalized = jax.random.uniform(k4, (B, num_dims), minval=-0.2, maxval=1.2,
                                      dtype=jnp.float32)

    out = gauss_vector_forward(
        inputs, scope, raw_means, raw_sigmas, marginalized,
        num_gauss=num_gauss, rv_dim=rv_dim,
        gauss_min_mean=gauss_min_mean, gauss_max_mean=gauss_max_mean,
        gauss_min_sigma=gauss_min_sigma, gauss_max_sigma=gauss_max_sigma,
        batch_tile=8)                 # B=16, TB=8 -> grid=(2,), exercises pipelining / megacore
    out = jax.block_until_ready(out)

    # ---- pure-JAX reference (mirrors the PyTorch module exactly) ----
    local_x = inputs[:, np.asarray(scope)]                                    # [B, L, R]
    mu = jax.nn.sigmoid(raw_means) * (gauss_max_mean - gauss_min_mean) + gauss_min_mean
    mu = mu.reshape(B, L, num_gauss, rv_dim)
    sig = gauss_min_sigma + (gauss_max_sigma - gauss_min_sigma) * jax.nn.sigmoid(raw_sigmas)
    sig = sig.reshape(B, L, num_gauss, rv_dim)
    x4 = local_x[:, :, None, :]                                               # [B, L, 1, R]
    lp = -0.5 * (x4 - mu) ** 2 / sig - 0.5 * jnp.log(sig) - 0.5 * jnp.log(2.0 * jnp.pi)
    lp = lp.sum(-1)                                                           # [B, L, G]
    lm = jnp.clip(marginalized[:, np.asarray(scope)], 0.0, 1.0)[:, :, None]
    lp = lp * (1.0 - lm)
    ref = lp.sum(1)                                                           # [B, G]

    assert out.shape == (B, num_gauss), out.shape
    # Tolerance accounts for pl.reciprocal(approx=True) (~2^-12 rel) and possible reduced-precision
    # MXU passes in the constant broadcast/fold matmuls; real bugs produce O(1) relative errors.
    rel_err = jnp.max(jnp.abs(out - ref) / (jnp.abs(ref) + 1.0))
    assert rel_err < 3e-2, float(rel_err)
    print("KERNEL_OK")
</pallas_src>

<mosaic_0001>
module attributes {stable_mosaic.version = 11 : i64} {
  func.func @_gauss_vector_kernel(%arg0: i32, %arg1: memref<16x512xf32, #tpu.memory_space<vmem>>, %arg2: memref<512x32xf32, #tpu.memory_space<vmem>>, %arg3: memref<8x16xf32, #tpu.memory_space<vmem>>, %arg4: memref<8x512xf32, #tpu.memory_space<vmem>>, %arg5: memref<8x512xf32, #tpu.memory_space<vmem>>, %arg6: memref<8x512xf32, #tpu.memory_space<vmem>>, %arg7: memref<8x8xf32, #tpu.memory_space<vmem>>, %arg8: memref<8x32xf32, #tpu.memory_space<vmem>>) attributes {dimension_semantics = [#tpu.dimension_semantics<parallel>], iteration_bounds = array<i64: 2>, scalar_prefetch = 0 : i64, scratch_operands = 0 : i64, tpu.core_type = #tpu.core_type<tc>, window_params = [{pipeline_mode = #tpu.pipeline_mode<synchronous>, transform_indices = @transform_0, window_bounds = array<i64: 16, 512>}, {pipeline_mode = #tpu.pipeline_mode<synchronous>, transform_indices = @transform_1, window_bounds = array<i64: 512, 32>}, {transform_indices = @transform_2, window_bounds = array<i64: 8, 16>}, {transform_indices = @transform_3, window_bounds = array<i64: 8, 512>}, {transform_indices = @transform_4, window_bounds = array<i64: 8, 512>}, {pipeline_mode = #tpu.pipeline_mode<synchronous>, transform_indices = @transform_5, window_bounds = array<i64: 8, 512>}, {transform_indices = @transform_6, window_bounds = array<i64: 8, 8>}, {transform_indices = @transform_7, window_bounds = array<i64: 8, 32>}]} {
    %c0 = arith.constant 0 : index
    %c0_0 = arith.constant 0 : index
    %0 = vector.load %arg3[%c0, %c0_0] : memref<8x16xf32, #tpu.memory_space<vmem>>, vector<8x16xf32>
    %c0_1 = arith.constant 0 : index
    %c0_2 = arith.constant 0 : index
    %1 = vector.load %arg1[%c0_1, %c0_2] : memref<16x512xf32, #tpu.memory_space<vmem>>, vector<16x512xf32>
    %cst = arith.constant dense<0.000000e+00> : vector<8x512xf32>
    %2 = tpu.matmul %0, %1, %cst {dimension_numbers = #tpu.dot_dimension_numbers<[1], [0], [0], [1], [0, 0, 1, 1], [], []>} : vector<8x16xf32>, vector<16x512xf32>, vector<8x512xf32> -> vector<8x512xf32>
    %c0_3 = arith.constant 0 : index
    %c0_4 = arith.constant 0 : index
    %3 = vector.load %arg4[%c0_3, %c0_4] : memref<8x512xf32, #tpu.memory_space<vmem>>, vector<8x512xf32>
    %cst_5 = arith.constant 5.000000e-01 : f32
    %4 = vector.broadcast %cst_5 : f32 to vector<8x512xf32>
    %5 = arith.mulf %4, %3 : vector<8x512xf32>
    %6 = math.tanh %5 : vector<8x512xf32>
    %cst_6 = arith.constant 2.000000e+00 : f32
    %7 = vector.broadcast %cst_6 : f32 to vector<8x512xf32>
    %8 = arith.mulf %7, %6 : vector<8x512xf32>
    %cst_7 = arith.constant 0.000000e+00 : f32
    %9 = vector.broadcast %cst_7 : f32 to vector<8x512xf32>
    %10 = arith.addf %8, %9 : vector<8x512xf32>
    %11 = arith.subf %2, %10 : vector<8x512xf32>
    %c0_8 = arith.constant 0 : index
    %c0_9 = arith.constant 0 : index
    %12 = vector.load %arg5[%c0_8, %c0_9] : memref<8x512xf32, #tpu.memory_space<vmem>>, vector<8x512xf32>
    %cst_10 = arith.constant 5.000000e-01 : f32
    %13 = vector.broadcast %cst_10 : f32 to vector<8x512xf32>
    %14 = arith.mulf %13, %12 : vector<8x512xf32>
    %15 = math.tanh %14 : vector<8x512xf32>
    %cst_11 = arith.constant 4.500000e-01 : f32
    %16 = vector.broadcast %cst_11 : f32 to vector<8x512xf32>
    %17 = arith.mulf %16, %15 : vector<8x512xf32>
    %cst_12 = arith.constant 5.500000e-01 : f32
    %18 = vector.broadcast %cst_12 : f32 to vector<8x512xf32>
    %19 = arith.addf %18, %17 : vector<8x512xf32>
    %20 = tpu.reciprocal %19 {approx = true} : vector<8x512xf32> -> vector<8x512xf32>
    %21 = arith.mulf %11, %11 : vector<8x512xf32>
    %22 = arith.mulf %21, %20 : vector<8x512xf32>
    %23 = math.log %19 : vector<8x512xf32>
    %24 = arith.addf %22, %23 : vector<8x512xf32>
    %c0_13 = arith.constant 0 : index
    %c0_14 = arith.constant 0 : index
    %25 = vector.load %arg7[%c0_13, %c0_14] : memref<8x8xf32, #tpu.memory_space<vmem>>, vector<8x8xf32>
    %cst_15 = arith.constant 0.000000e+00 : f32
    %cst_16 = arith.constant 1.000000e+00 : f32
    %26 = vector.broadcast %cst_15 : f32 to vector<8x8xf32>
    %27 = arith.maximumf %26, %25 : vector<8x8xf32>
    %28 = vector.broadcast %cst_16 : f32 to vector<8x8xf32>
    %29 = arith.minimumf %28, %27 : vector<8x8xf32>
    %cst_17 = arith.constant 1.000000e+00 : f32
    %30 = vector.broadcast %cst_17 : f32 to vector<8x8xf32>
    %31 = arith.subf %30, %29 : vector<8x8xf32>
    %c0_18 = arith.constant 0 : index
    %c0_19 = arith.constant 0 : index
    %32 = vector.load %arg6[%c0_18, %c0_19] : memref<8x512xf32, #tpu.memory_space<vmem>>, vector<8x512xf32>
    %cst_20 = arith.constant dense<0.000000e+00> : vector<8x512xf32>
    %33 = tpu.matmul %31, %32, %cst_20 {dimension_numbers = #tpu.dot_dimension_numbers<[1], [0], [0], [1], [0, 0, 1, 1], [], []>} : vector<8x8xf32>, vector<8x512xf32>, vector<8x512xf32> -> vector<8x512xf32>
    %34 = arith.mulf %24, %33 : vector<8x512xf32>
    %cst_21 = arith.constant dense<0.000000e+00> : vector<8xf32>
    %35 = vector.multi_reduction <add>, %31, %cst_21 [1] : vector<8x8xf32> to vector<8xf32>
    %36 = vector.shape_cast %35 : vector<8xf32> to vector<8x1xf32>
    %cst_22 = arith.constant -1.83787704 : f32
    %37 = vector.broadcast %cst_22 : f32 to vector<8x1xf32>
    %38 = arith.mulf %37, %36 : vector<8x1xf32>
    %c0_23 = arith.constant 0 : index
    %c0_24 = arith.constant 0 : index
    %39 = vector.load %arg2[%c0_23, %c0_24] : memref<512x32xf32, #tpu.memory_space<vmem>>, vector<512x32xf32>
    %cst_25 = arith.constant dense<0.000000e+00> : vector<8x32xf32>
    %40 = tpu.matmul %34, %39, %cst_25 {dimension_numbers = #tpu.dot_dimension_numbers<[1], [0], [0], [1], [0, 0, 1, 1], [], []>} : vector<8x512xf32>, vector<512x32xf32>, vector<8x32xf32> -> vector<8x32xf32>
    %41 = vector.broadcast %38 : vector<8x1xf32> to vector<8x32xf32>
    %42 = arith.addf %40, %41 : vector<8x32xf32>
    %c0_26 = arith.constant 0 : index
    %c0_27 = arith.constant 0 : index
    %43 = vector.load %arg8[%c0_26, %c0_27] : memref<8x32xf32, #tpu.memory_space<vmem>>, vector<8x32xf32>
    tpu.vector_store %arg8[%c0_26, %c0_27], %42 {strides = array<i32>} : memref<8x32xf32, #tpu.memory_space<vmem>>, vector<8x32xf32>,
    return
  }
  func.func @transform_0(%arg0: i32) -> (i32, i32) {
    %c0_i32 = arith.constant 0 : i32
    %c0_i32_0 = arith.constant 0 : i32
    %c0_i32_1 = arith.constant 0 : i32
    return %c0_i32, %c0_i32_0 : i32, i32
  }
  func.func @transform_1(%arg0: i32) -> (i32, i32) {
    %c0_i32 = arith.constant 0 : i32
    %c0_i32_0 = arith.constant 0 : i32
    %c0_i32_1 = arith.constant 0 : i32
    return %c0_i32, %c0_i32_0 : i32, i32
  }
  func.func @transform_2(%arg0: i32) -> (i32, i32) {
    %c0_i32 = arith.constant 0 : i32
    %c0_i32_0 = arith.constant 0 : i32
    return %arg0, %c0_i32 : i32, i32
  }
  func.func @transform_3(%arg0: i32) -> (i32, i32) {
    %c0_i32 = arith.constant 0 : i32
    %c0_i32_0 = arith.constant 0 : i32
    return %arg0, %c0_i32 : i32, i32
  }
  func.func @transform_4(%arg0: i32) -> (i32, i32) {
    %c0_i32 = arith.constant 0 : i32
    %c0_i32_0 = arith.constant 0 : i32
    return %arg0, %c0_i32 : i32, i32
  }
  func.func @transform_5(%arg0: i32) -> (i32, i32) {
    %c0_i32 = arith.constant 0 : i32
    %c0_i32_0 = arith.constant 0 : i32
    %c0_i32_1 = arith.constant 0 : i32
    return %c0_i32, %c0_i32_0 : i32, i32
  }
  func.func @transform_6(%arg0: i32) -> (i32, i32) {
    %c0_i32 = arith.constant 0 : i32
    %c0_i32_0 = arith.constant 0 : i32
    return %arg0, %c0_i32 : i32, i32
  }
  func.func @transform_7(%arg0: i32) -> (i32, i32) {
    %c0_i32 = arith.constant 0 : i32
    %c0_i32_0 = arith.constant 0 : i32
    return %arg0, %c0_i32 : i32, i32
  }
}

</mosaic_0001>

<llo_original>
// kernel: tpu_custom_call.1
$region0: #{tpu_custom_call.1}
  #allocation0 [shape = 'u32[]', space=smem, size = 0x4, offset = 0x4, fixed_abs, tag = 'smem constant byte address 0x4 - core index']
  #allocation1 [shape = 'u32[144,128]{1,0:T(1,128)}', space=vmem, size = 0x12000, scoped, tag = 'internal scratch']
  %s0 = inlined_call_operand.vmem [shape: f32[16,512], index: 0, kind: input, shape index: {}]
  %s1 = inlined_call_operand.vmem [shape: f32[512,32], index: 1, kind: input, shape index: {}]
  %s2 = inlined_call_operand.vmem [shape: f32[16,16], index: 2, kind: input, shape index: {}]
  %s3 = inlined_call_operand.vmem [shape: f32[16,512], index: 3, kind: input, shape index: {}]
  %s4 = inlined_call_operand.vmem [shape: f32[16,512], index: 4, kind: input, shape index: {}]
  %s5 = inlined_call_operand.vmem [shape: f32[8,512], index: 5, kind: input, shape index: {}]
  %s6 = inlined_call_operand.vmem [shape: f32[16,8], index: 6, kind: input, shape index: {}]
  %s7 = inlined_call_operand.hbm [shape: f32[16,32], index: 7, kind: output, shape index: {}]
  %s8 = sld [smem:[#allocation0]]
  $region61: #{tpu_custom_call.1} parent=0
    _
  %s10 = ssub.s32 1, %s8
  %s11 = scalar_select 0, %s10, %s8
  $region1: #{tpu_custom_call.1} parent=0
    #allocation2 [shape = 'u8[8192]{0}', space=vmem, size = 0x2000, scoped, tag = 'output window, operand 0']
    #allocation3 [shape = 's32[2]{0}', space=sflag, size = 0x8, scoped, tag = 'scoped memory for tpu_custom_call.1']
    %12 = vsyncpa [#allocation3], 0
    %s13 = scalar_lea.sflag [#allocation3], 1
    %14 = vsyncpa %s13, 0
    loop: start=0, step=1, limit=4
    $region2: #{tpu_custom_call.1} parent=1 // loop_pre_header
      _
    $region3: #{tpu_custom_call.1} parent=1 // loop_header
      %s16 = sphi 0, %s20
      %p17 = scmp.ge.s32.totalorder %s16, 4
      %s24 = sphi 0, %s24
      %s26 = sphi 0, %s24
      %s27 = sphi 0, %s26
      %s41 = sphi 0, %s27
      %s45 = sphi 0, %s45
      %s47 = sphi 0, %s45
      %s48 = sphi 0, %s47
      %s62 = sphi 0, %s48
      %s68 = sphi 0, %s70
      %s71 = sphi 0, %s68
      %s72 = sphi 0, %s71
      %s88 = sphi 0, %s72
      %s94 = sphi 0, %s96
      %s97 = sphi 0, %s94
      %s98 = sphi 0, %s97
      %s114 = sphi 0, %s98
      %s120 = sphi 0, %s122
      %s123 = sphi 0, %s120
      %s124 = sphi 0, %s123
      %s140 = sphi 0, %s124
      %s144 = sphi 0, %s144
      %s146 = sphi 0, %s144
      %s147 = sphi 0, %s146
      %s161 = sphi 0, %s147
      %s167 = sphi 0, %s169
      %s170 = sphi 0, %s167
      %s171 = sphi 0, %s170
      %s187 = sphi 0, %s171
      %s193 = sphi 0, %s195
      %s196 = sphi 0, %s193
      %s197 = sphi 0, %s196
      %s213 = sphi 0, %s197
    $region4: #{tpu_custom_call.1} parent=1 // loop_header_branch
      %19 = sbr.rel (%p17) target = $region8
    $region5: #{tpu_custom_call.1} parent=1 // loop_body
      %s21 = ssub.s32 %s16, 1
      %s22 = ssub.s32 %s16, 2
      %s23 = sadd.s32 %s16, 1
      %s25 = sadd.s32 %s24, 1
      %p28 = scmp.eq.s32.totalorder %s16, 1
      %p29 = scmp.ne.s32.totalorder %s24, %s26
      %p30 = scmp.eq.s32.totalorder %s16, 0
      %p31 = por %p29, %p30
      %p32 = scmp.ne.s32.totalorder %s24, %s26
      %p33 = scmp.eq.s32.totalorder %s21, 1
      %p34 = por %p32, %p33
      %p35 = scmp.ne.s32.totalorder %s26, %s27
      %p36 = scmp.eq.s32.totalorder %s21, 0
      %p37 = por %p35, %p36
      %p38 = scmp.ne.s32.totalorder %s26, %s27
      %p39 = scmp.eq.s32.totalorder %s22, 1
      %p40 = por %p38, %p39
      %p42 = scmp.ne.s32.totalorder %s27, %s41
      %p43 = scmp.eq.s32.totalorder %s22, 0
      %p44 = por %p42, %p43
      %s46 = sadd.s32 %s45, 1
      %p49 = scmp.eq.s32.totalorder %s16, 1
      %p50 = scmp.ne.s32.totalorder %s45, %s47
      %p51 = scmp.eq.s32.totalorder %s16, 0
      %p52 = por %p50, %p51
      %p53 = scmp.ne.s32.totalorder %s45, %s47
      %p54 = scmp.eq.s32.totalorder %s21, 1
      %p55 = por %p53, %p54
      %p56 = scmp.ne.s32.totalorder %s47, %s48
      %p57 = scmp.eq.s32.totalorder %s21, 0
      %p58 = por %p56, %p57
      %p59 = scmp.ne.s32.totalorder %s47, %s48
      %p60 = scmp.eq.s32.totalorder %s22, 1
      %p61 = por %p59, %p60
      %p63 = scmp.ne.s32.totalorder %s48, %s62
      %p64 = scmp.eq.s32.totalorder %s22, 0
      %p65 = por %p63, %p64
      %s66 = ssub.s32 %s16, %s23
      %p67 = scmp.eq.s32.totalorder %s66, 0
      %s69 = sadd.s32 %s68, 1
      %s70 = scalar_select %p67, %s68, %s69
      %p73 = pneg %p67
      %p74 = scmp.eq.s32.totalorder %s16, 1
      %p75 = por %p73, %p74
      %p76 = scmp.ne.s32.totalorder %s68, %s71
      %p77 = scmp.eq.s32.totalorder %s16, 0
      %p78 = por %p76, %p77
      %p79 = scmp.ne.s32.totalorder %s68, %s71
      %p80 = scmp.eq.s32.totalorder %s21, 1
      %p81 = por %p79, %p80
      %p82 = scmp.ne.s32.totalorder %s71, %s72
      %p83 = scmp.eq.s32.totalorder %s21, 0
      %p84 = por %p82, %p83
      %p85 = scmp.ne.s32.totalorder %s71, %s72
      %p86 = scmp.eq.s32.totalorder %s22, 1
      %p87 = por %p85, %p86
      %p89 = scmp.ne.s32.totalorder %s72, %s88
      %p90 = scmp.eq.s32.totalorder %s22, 0
      %p91 = por %p89, %p90
      %s92 = ssub.s32 %s16, %s23
      %p93 = scmp.eq.s32.totalorder %s92, 0
      %s95 = sadd.s32 %s94, 1
      %s96 = scalar_select %p93, %s94, %s95
      %p99 = pneg %p93
      %p100 = scmp.eq.s32.totalorder %s16, 1
      %p101 = por %p99, %p100
      %p102 = scmp.ne.s32.totalorder %s94, %s97
      %p103 = scmp.eq.s32.totalorder %s16, 0
      %p104 = por %p102, %p103
      %p105 = scmp.ne.s32.totalorder %s94, %s97
      %p106 = scmp.eq.s32.totalorder %s21, 1
      %p107 = por %p105, %p106
      %p108 = scmp.ne.s32.totalorder %s97, %s98
      %p109 = scmp.eq.s32.totalorder %s21, 0
      %p110 = por %p108, %p109
      %p111 = scmp.ne.s32.totalorder %s97, %s98
      %p112 = scmp.eq.s32.totalorder %s22, 1
      %p113 = por %p111, %p112
      %p115 = scmp.ne.s32.totalorder %s98, %s114
      %p116 = scmp.eq.s32.totalorder %s22, 0
      %p117 = por %p115, %p116
      %s118 = ssub.s32 %s16, %s23
      %p119 = scmp.eq.s32.totalorder %s118, 0
      %s121 = sadd.s32 %s120, 1
      %s122 = scalar_select %p119, %s120, %s121
      %p125 = pneg %p119
      %p126 = scmp.eq.s32.totalorder %s16, 1
      %p127 = por %p125, %p126
      %p128 = scmp.ne.s32.totalorder %s120, %s123
      %p129 = scmp.eq.s32.totalorder %s16, 0
      %p130 = por %p128, %p129
      %p131 = scmp.ne.s32.totalorder %s120, %s123
      %p132 = scmp.eq.s32.totalorder %s21, 1
      %p133 = por %p131, %p132
      %p134 = scmp.ne.s32.totalorder %s123, %s124
      %p135 = scmp.eq.s32.totalorder %s21, 0
      %p136 = por %p134, %p135
      %p137 = scmp.ne.s32.totalorder %s123, %s124
      %p138 = scmp.eq.s32.totalorder %s22, 1
      %p139 = por %p137, %p138
      %p141 = scmp.ne.s32.totalorder %s124, %s140
      %p142 = scmp.eq.s32.totalorder %s22, 0
      %p143 = por %p141, %p142
      %s145 = sadd.s32 %s144, 1
      %p148 = scmp.eq.s32.totalorder %s16, 1
      %p149 = scmp.ne.s32.totalorder %s144, %s146
      %p150 = scmp.eq.s32.totalorder %s16, 0
      %p151 = por %p149, %p150
      %p152 = scmp.ne.s32.totalorder %s144, %s146
      %p153 = scmp.eq.s32.totalorder %s21, 1
      %p154 = por %p152, %p153
      %p155 = scmp.ne.s32.totalorder %s146, %s147
      %p156 = scmp.eq.s32.totalorder %s21, 0
      %p157 = por %p155, %p156
      %p158 = scmp.ne.s32.totalorder %s146, %s147
      %p159 = scmp.eq.s32.totalorder %s22, 1
      %p160 = por %p158, %p159
      %p162 = scmp.ne.s32.totalorder %s147, %s161
      %p163 = scmp.eq.s32.totalorder %s22, 0
      %p164 = por %p162, %p163
      %s165 = ssub.s32 %s16, %s23
      %p166 = scmp.eq.s32.totalorder %s165, 0
      %s168 = sadd.s32 %s167, 1
      %s169 = scalar_select %p166, %s167, %s168
      %p172 = pneg %p166
      %p173 = scmp.eq.s32.totalorder %s16, 1
      %p174 = por %p172, %p173
      %p175 = scmp.ne.s32.totalorder %s167, %s170
      %p176 = scmp.eq.s32.totalorder %s16, 0
      %p177 = por %p175, %p176
      %p178 = scmp.ne.s32.totalorder %s167, %s170
      %p179 = scmp.eq.s32.totalorder %s21, 1
      %p180 = por %p178, %p179
      %p181 = scmp.ne.s32.totalorder %s170, %s171
      %p182 = scmp.eq.s32.totalorder %s21, 0
      %p183 = por %p181, %p182
      %p184 = scmp.ne.s32.totalorder %s170, %s171
      %p185 = scmp.eq.s32.totalorder %s22, 1
      %p186 = por %p184, %p185
      %p188 = scmp.ne.s32.totalorder %s171, %s187
      %p189 = scmp.eq.s32.totalorder %s22, 0
      %p190 = por %p188, %p189
      %s191 = ssub.s32 %s16, %s23
      %p192 = scmp.eq.s32.totalorder %s191, 0
      %s194 = sadd.s32 %s193, 1
      %s195 = scalar_select %p192, %s193, %s194
      %p198 = pneg %p192
      %p199 = scmp.eq.s32.totalorder %s16, 1
      %p200 = por %p198, %p199
      %p201 = scmp.ne.s32.totalorder %s193, %s196
      %p202 = scmp.eq.s32.totalorder %s16, 0
      %p203 = por %p201, %p202
      %p204 = scmp.ne.s32.totalorder %s193, %s196
      %p205 = scmp.eq.s32.totalorder %s21, 1
      %p206 = por %p204, %p205
      %p207 = scmp.ne.s32.totalorder %s196, %s197
      %p208 = scmp.eq.s32.totalorder %s21, 0
      %p209 = por %p207, %p208
      %p210 = scmp.ne.s32.totalorder %s196, %s197
      %p211 = scmp.eq.s32.totalorder %s22, 1
      %p212 = por %p210, %p211
      %p214 = scmp.ne.s32.totalorder %s197, %s213
      %p215 = scmp.eq.s32.totalorder %s22, 0
      %p216 = por %p214, %p215
      %p217 = scmp.le.s32.totalorder 1, %s16
      %p218 = scmp.lt.s32.totalorder %s16, 3
      %p219 = pnand %p217, %p218
      %p220 = pneg %p219
      // Predicated region
      $region9: #{tpu_custom_call.1} parent=5 // pred_check
        _
      $region10: #{tpu_custom_call.1} parent=5 // pred_check_branch
        %222 = sbr.rel (%p219) target = $region12
      $region11: #{tpu_custom_call.1} parent=5 // pred_region
        %s223 = ssub.s32 %s16, 1
        // Predicated region
        $region13: #{tpu_custom_call.1} parent=11 // pred_check
          %p224 = pneg %p37
        $region14: #{tpu_custom_call.1} parent=11 // pred_check_branch
          %226 = sbr.rel (%p224) target = $region16
        $region15: #{tpu_custom_call.1} parent=11 // pred_region
          _
        $region16: #{tpu_custom_call.1} parent=11 // pred_fallthru
          _
        // Predicated region
        $region17: #{tpu_custom_call.1} parent=11 // pred_check
          %p227 = pneg %p58
        $region18: #{tpu_custom_call.1} parent=11 // pred_check_branch
          %229 = sbr.rel (%p227) target = $region20
        $region19: #{tpu_custom_call.1} parent=11 // pred_region
          _
        $region20: #{tpu_custom_call.1} parent=11 // pred_fallthru
          _
        // Predicated region
        $region21: #{tpu_custom_call.1} parent=11 // pred_check
          %p230 = pneg %p157
        $region22: #{tpu_custom_call.1} parent=11 // pred_check_branch
          %232 = sbr.rel (%p230) target = $region24
        $region23: #{tpu_custom_call.1} parent=11 // pred_region
          _
        $region24: #{tpu_custom_call.1} parent=11 // pred_fallthru
          _
      $region12: #{tpu_custom_call.1} parent=5 // pred_fallthru
        _
      %p233 = scmp.lt.s32.totalorder %s16, 2
      // Predicated region
      $region25: #{tpu_custom_call.1} parent=5 // pred_check
        %p234 = pneg %p233
      $region26: #{tpu_custom_call.1} parent=5 // pred_check_branch
        %236 = sbr.rel (%p234) target = $region28
      $region27: #{tpu_custom_call.1} parent=5 // pred_region
        // Predicated region
        $region29: #{tpu_custom_call.1} parent=27 // pred_check
          %p237 = pneg %p78
        $region30: #{tpu_custom_call.1} parent=27 // pred_check_branch
          %239 = sbr.rel (%p237) target = $region32
        $region31: #{tpu_custom_call.1} parent=27 // pred_region
          %p240 = scmp.lt.s32.totalorder %s16, 1
          %s241 = scalar_select %p240, %s16, 1
          %s242 = smul.addr %s241, 8
          %s243 = scalar_lea.vmem %s2, %s242
        $region32: #{tpu_custom_call.1} parent=27 // pred_fallthru
          _
        // Predicated region
        $region33: #{tpu_custom_call.1} parent=27 // pred_check
          %p244 = pneg %p104
        $region34: #{tpu_custom_call.1} parent=27 // pred_check_branch
          %246 = sbr.rel (%p244) target = $region36
        $region35: #{tpu_custom_call.1} parent=27 // pred_region
          %p247 = scmp.lt.s32.totalorder %s16, 1
          %s248 = scalar_select %p247, %s16, 1
          %s249 = smul.addr %s248, 4
          %s250 = smul.addr %s249, 8
          %s251 = scalar_lea.vmem %s3, %s250
        $region36: #{tpu_custom_call.1} parent=27 // pred_fallthru
          _
        // Predicated region
        $region37: #{tpu_custom_call.1} parent=27 // pred_check
          %p252 = pneg %p130
        $region38: #{tpu_custom_call.1} parent=27 // pred_check_branch
          %254 = sbr.rel (%p252) target = $region40
        $region39: #{tpu_custom_call.1} parent=27 // pred_region
          %p255 = scmp.lt.s32.totalorder %s16, 1
          %s256 = scalar_select %p255, %s16, 1
          %s257 = smul.addr %s256, 4
          %s258 = smul.addr %s257, 8
          %s259 = scalar_lea.vmem %s4, %s258
        $region40: #{tpu_custom_call.1} parent=27 // pred_fallthru
          _
        // Predicated region
        $region41: #{tpu_custom_call.1} parent=27 // pred_check
          %p260 = pneg %p177
        $region42: #{tpu_custom_call.1} parent=27 // pred_check_branch
          %262 = sbr.rel (%p260) target = $region44
        $region43: #{tpu_custom_call.1} parent=27 // pred_region
          %p263 = scmp.lt.s32.totalorder %s16, 1
          %s264 = scalar_select %p263, %s16, 1
          %s265 = smul.addr %s264, 8
          %s266 = scalar_lea.vmem %s6, %s265
        $region44: #{tpu_custom_call.1} parent=27 // pred_fallthru
          _
      $region28: #{tpu_custom_call.1} parent=5 // pred_fallthru
        _
      %p267 = scmp.le.s32.totalorder 1, %s16
      %p268 = scmp.lt.s32.totalorder %s16, 3
      %p269 = pnand %p267, %p268
      %p270 = pneg %p269
      // Predicated region
      $region45: #{tpu_custom_call.1} parent=5 // pred_check
        _
      $region46: #{tpu_custom_call.1} parent=5 // pred_check_branch
        %272 = sbr.rel (%p269) target = $region48
      $region47: #{tpu_custom_call.1} parent=5 // pred_region
        %s273 = ssub.s32 %s16, 1
        %p274 = pneg %p37
        %p275 = pneg %p34
        %p276 = pneg %p58
        %p277 = pneg %p55
        %p278 = scmp.lt.s32.totalorder %s21, 1
        %s279 = scalar_select %p278, %s21, 1
        %s280 = smul.addr %s279, 8
        %s281 = scalar_lea.vmem %s2, %s280
        %p282 = pneg %p84
        %p283 = pneg %p81
        %p284 = scmp.lt.s32.totalorder %s21, 1
        %s285 = scalar_select %p284, %s21, 1
        %s286 = smul.addr %s285, 4
        %s287 = smul.addr %s286, 8
        %s288 = scalar_lea.vmem %s3, %s287
        %p289 = pneg %p110
        %p290 = pneg %p107
        %p291 = scmp.lt.s32.totalorder %s21, 1
        %s292 = scalar_select %p291, %s21, 1
        %s293 = smul.addr %s292, 4
        %s294 = smul.addr %s293, 8
        %s295 = scalar_lea.vmem %s4, %s294
        %p296 = pneg %p136
        %p297 = pneg %p133
        %p298 = pneg %p157
        %p299 = pneg %p154
        %p300 = scmp.lt.s32.totalorder %s21, 1
        %s301 = scalar_select %p300, %s21, 1
        %s302 = smul.addr %s301, 8
        %s303 = scalar_lea.vmem %s6, %s302
        %p304 = pneg %p183
        %p305 = pneg %p180
        %p306 = pneg %p209
        %p307 = pneg %p206
        %s308 = sand.u32 %s196, 1
        %s309 = scalar_lea.sflag [#allocation3], %s308
        %s310 = sand.u32 %s196, 1
        %s311 = smul.addr %s310, 8
        %s312 = scalar_lea.vmem [#allocation2], %s311
        %p313 = scmp.lt.s32.totalorder %s21, 1
        %s314 = scalar_select %p313, %s21, 1
        %s315 = smul.addr %s314, 8
        %s316 = scalar_lea.vmem %s2, %s315
        %p317 = scmp.lt.s32.totalorder %s21, 1
        %s318 = scalar_select %p317, %s21, 1
        %s319 = smul.addr %s318, 4
        %s320 = smul.addr %s319, 8
        %s321 = scalar_lea.vmem %s3, %s320
        %p322 = scmp.lt.s32.totalorder %s21, 1
        %s323 = scalar_select %p322, %s21, 1
        %s324 = smul.addr %s323, 4
        %s325 = smul.addr %s324, 8
        %s326 = scalar_lea.vmem %s4, %s325
        %p327 = scmp.lt.s32.totalorder %s21, 1
        %s328 = scalar_select %p327, %s21, 1
        %s329 = smul.addr %s328, 8
        %s330 = scalar_lea.vmem %s6, %s329
        %v331 = vld [vmem:[%s316] sm:$0xff]
        %v332 = vld [vmem:[%s0] sm:$0xff]
        %v333 = vld [vmem:[%s0 + $0x8] sm:$0xff]
        %v334 = vld [vmem:[%s0 + $0x10] sm:$0xff]
        %v335 = vld [vmem:[%s0 + $0x18] sm:$0xff]
        %v336 = vld [vmem:[%s0 + $0x20] sm:$0xff]
        %v337 = vld [vmem:[%s0 + $0x28] sm:$0xff]
        %v338 = vld [vmem:[%s0 + $0x30] sm:$0xff]
        %v339 = vld [vmem:[%s0 + $0x38] sm:$0xff]
        %vm340 = vcmask 130048
        %v342 = vsel %vm340, %v331, 0
        %344 = vmatprep.subr.mxu0 0.0
        %345 = vmatpush1.msra.mxu0 0.0
        %346 = vmatprep.subr.mxu0 0.0
        %347 = vmatpush1.msra.mxu0 0.0
        %348 = vmatprep.subr.mxu0 0.0
        %349 = vmatpush1.msra.mxu0 0.0
        %350 = vmatprep.subr.mxu0 0.0
        %351 = vmatpush1.msra.mxu0 0.0
        %352 = vmatprep.subr.mxu0 0.0
        %353 = vmatpush1.msra.mxu0 0.0
        %354 = vmatprep.subr.mxu0 0.0
        %355 = vmatpush1.msra.mxu0 0.0
        %356 = vmatprep.subr.mxu0 0.0
        %357 = vmatpush1.msra.mxu0 0.0
        %358 = vmatprep.subr.mxu0 0.0
        %359 = vmatpush1.msra.mxu0 0.0
        %360 = vmatprep.subr.mxu0 0.0
        %361 = vmatpush1.msra.mxu0 0.0
        %362 = vmatprep.subr.mxu0 0.0
        %363 = vmatpush1.msra.mxu0 0.0
        %364 = vmatprep.subr.mxu0 0.0
        %365 = vmatpush1.msra.mxu0 0.0
        %366 = vmatprep.subr.mxu0 0.0
        %367 = vmatpush1.msra.mxu0 0.0
        %368 = vmatprep.subr.mxu0 0.0
        %369 = vmatpush1.msra.mxu0 0.0
        %370 = vmatprep.subr.mxu0 0.0
        %371 = vmatpush1.msra.mxu0 0.0
        %372 = vmatprep.subr.mxu0 %v337
        %373 = vmatpush1.msra.mxu0 %v336
        %374 = vmatprep.subr.mxu0 %v333
        %375 = vmatpush1.msra.mxu0 %v332
        %376 = vmatprep.subr.mxu0 0.0
        %377 = vmatpush2.msra.mxu0 0.0
        %378 = vmatprep.subr.mxu0 0.0
        %379 = vmatpush2.msra.mxu0 0.0
        %380 = vmatprep.subr.mxu0 0.0
        %381 = vmatpush2.msra.mxu0 0.0
        %382 = vmatprep.subr.mxu0 0.0
        %383 = vmatpush2.msra.mxu0 0.0
        %384 = vmatprep.subr.mxu0 0.0
        %385 = vmatpush2.msra.mxu0 0.0
        %386 = vmatprep.subr.mxu0 0.0
        %387 = vmatpush2.msra.mxu0 0.0
        %388 = vmatprep.subr.mxu0 0.0
        %389 = vmatpush2.msra.mxu0 0.0
        %390 = vmatprep.subr.mxu0 0.0
        %391 = vmatpush2.msra.mxu0 0.0
        %392 = vmatprep.subr.mxu0 0.0
        %393 = vmatpush2.msra.mxu0 0.0
        %394 = vmatprep.subr.mxu0 0.0
        %395 = vmatpush2.msra.mxu0 0.0
        %396 = vmatprep.subr.mxu0 0.0
        %397 = vmatpush2.msra.mxu0 0.0
        %398 = vmatprep.subr.mxu0 0.0
        %399 = vmatpush2.msra.mxu0 0.0
        %400 = vmatprep.subr.mxu0 0.0
        %401 = vmatpush2.msra.mxu0 0.0
        %402 = vmatprep.subr.mxu0 0.0
        %403 = vmatpush2.msra.mxu0 0.0
        %404 = vmatprep.subr.mxu0 0.0
        %405 = vmatpush2.msra.mxu0 0.0
        %406 = vmatprep.subr.mxu0 0.0
        %407 = vmatpush2.msra.mxu0 0.0
        %408 = vmatprep.mubr.f32.mxu0 0.0
        %409 = vmatmul.mubr.f32.gmra.mxu0 %v342
        %v410 = vpop.f32.mrf.mxu0
        %v411 = vadd.f32 0.0, %v410
        %v412 = vpop.f32.mrf.mxu0
        %v413 = vadd.f32 0.0, %v412
        %414 = vdwg.mxu0
        %415 = vmatprep.subr.mxu0 0.0
        %416 = vmatpush1.msra.mxu0 0.0
        %417 = vmatprep.subr.mxu0 0.0
        %418 = vmatpush1.msra.mxu0 0.0
        %419 = vmatprep.subr.mxu0 0.0
        %420 = vmatpush1.msra.mxu0 0.0
        %421 = vmatprep.subr.mxu0 0.0
        %422 = vmatpush1.msra.mxu0 0.0
        %423 = vmatprep.subr.mxu0 0.0
        %424 = vmatpush1.msra.mxu0 0.0
        %425 = vmatprep.subr.mxu0 0.0
        %426 = vmatpush1.msra.mxu0 0.0
        %427 = vmatprep.subr.mxu0 0.0
        %428 = vmatpush1.msra.mxu0 0.0
        %429 = vmatprep.subr.mxu0 0.0
        %430 = vmatpush1.msra.mxu0 0.0
        %431 = vmatprep.subr.mxu0 0.0
        %432 = vmatpush1.msra.mxu0 0.0
        %433 = vmatprep.subr.mxu0 0.0
        %434 = vmatpush1.msra.mxu0 0.0
        %435 = vmatprep.subr.mxu0 0.0
        %436 = vmatpush1.msra.mxu0 0.0
        %437 = vmatprep.subr.mxu0 0.0
        %438 = vmatpush1.msra.mxu0 0.0
        %439 = vmatprep.subr.mxu0 0.0
        %440 = vmatpush1.msra.mxu0 0.0
        %441 = vmatprep.subr.mxu0 0.0
        %442 = vmatpush1.msra.mxu0 0.0
        %443 = vmatprep.subr.mxu0 %v339
        %444 = vmatpush1.msra.mxu0 %v338
        %445 = vmatprep.subr.mxu0 %v335
        %446 = vmatpush1.msra.mxu0 %v334
        %447 = vmatprep.subr.mxu0 0.0
        %448 = vmatpush2.msra.mxu0 0.0
        %449 = vmatprep.subr.mxu0 0.0
        %450 = vmatpush2.msra.mxu0 0.0
        %451 = vmatprep.subr.mxu0 0.0
        %452 = vmatpush2.msra.mxu0 0.0
        %453 = vmatprep.subr.mxu0 0.0
        %454 = vmatpush2.msra.mxu0 0.0
        %455 = vmatprep.subr.mxu0 0.0
        %456 = vmatpush2.msra.mxu0 0.0
        %457 = vmatprep.subr.mxu0 0.0
        %458 = vmatpush2.msra.mxu0 0.0
        %459 = vmatprep.subr.mxu0 0.0
        %460 = vmatpush2.msra.mxu0 0.0
        %461 = vmatprep.subr.mxu0 0.0
        %462 = vmatpush2.msra.mxu0 0.0
        %463 = vmatprep.subr.mxu0 0.0
        %464 = vmatpush2.msra.mxu0 0.0
        %465 = vmatprep.subr.mxu0 0.0
        %466 = vmatpush2.msra.mxu0 0.0
        %467 = vmatprep.subr.mxu0 0.0
        %468 = vmatpush2.msra.mxu0 0.0
        %469 = vmatprep.subr.mxu0 0.0
        %470 = vmatpush2.msra.mxu0 0.0
        %471 = vmatprep.subr.mxu0 0.0
        %472 = vmatpush2.msra.mxu0 0.0
        %473 = vmatprep.subr.mxu0 0.0
        %474 = vmatpush2.msra.mxu0 0.0
        %475 = vmatprep.subr.mxu0 0.0
        %476 = vmatpush2.msra.mxu0 0.0
        %477 = vmatprep.subr.mxu0 0.0
        %478 = vmatpush2.msra.mxu0 0.0
        %479 = vmatprep.mubr.f32.mxu0 0.0
        %480 = vmatmul.mubr.f32.gmra.mxu0 %v342
        %v481 = vpop.f32.mrf.mxu0
        %v482 = vadd.f32 0.0, %v481
        %v483 = vpop.f32.mrf.mxu0
        %v484 = vadd.f32 0.0, %v483
        %485 = vdwg.mxu0
        %v486 = vld [vmem:[%s321] sm:$0xff]
        %v487 = vld [vmem:[%s321 + $0x8] sm:$0xff]
        %v488 = vld [vmem:[%s321 + $0x10] sm:$0xff]
        %v489 = vld [vmem:[%s321 + $0x18] sm:$0xff]
        %v490 = vmul.f32 %v486, 0.5
        %v491 = vmul.f32 %v487, 0.5
        %v492 = vmul.f32 %v488, 0.5
        %v493 = vmul.f32 %v489, 0.5
        %v494 = vtanh.pop %v490
        %v495 = vtanh.pop %v491
        %v496 = vtanh.pop %v492
        %v497 = vtanh.pop %v493
        %v498 = vmul.f32 %v494, 2.0
        %v499 = vmul.f32 %v495, 2.0
        %v500 = vmul.f32 %v496, 2.0
        %v501 = vmul.f32 %v497, 2.0
        %v502 = vadd.f32 %v498, 0.0
        %v503 = vadd.f32 %v499, 0.0
        %v504 = vadd.f32 %v500, 0.0
        %v505 = vadd.f32 %v501, 0.0
        %v506 = vsub.f32 %v411, %v502
        %v507 = vsub.f32 %v413, %v503
        %v508 = vsub.f32 %v482, %v504
        %v509 = vsub.f32 %v484, %v505
        %v510 = vld [vmem:[%s326] sm:$0xff]
        %v511 = vld [vmem:[%s326 + $0x8] sm:$0xff]
        %v512 = vld [vmem:[%s326 + $0x10] sm:$0xff]
        %v513 = vld [vmem:[%s326 + $0x18] sm:$0xff]
        %v514 = vmul.f32 %v510, 0.5
        %v515 = vmul.f32 %v511, 0.5
        %v516 = vmul.f32 %v512, 0.5
        %v517 = vmul.f32 %v513, 0.5
        %v518 = vtanh.pop %v514
        %v519 = vtanh.pop %v515
        %v520 = vtanh.pop %v516
        %v521 = vtanh.pop %v517
        %v522 = vmul.f32 %v518, 0.45
        %v523 = vmul.f32 %v519, 0.45
        %v524 = vmul.f32 %v520, 0.45
        %v525 = vmul.f32 %v521, 0.45
        %v526 = vadd.f32 %v522, 0.55
        %v527 = vadd.f32 %v523, 0.55
        %v528 = vadd.f32 %v524, 0.55
        %v529 = vadd.f32 %v525, 0.55
        %v530 = vrcp.pop %v526
        %v531 = vrcp.pop %v527
        %v532 = vrcp.pop %v528
        %v533 = vrcp.pop %v529
        %v534 = vmul.f32 %v506, %v506
        %v535 = vmul.f32 %v507, %v507
        %v536 = vmul.f32 %v508, %v508
        %v537 = vmul.f32 %v509, %v509
        %v538 = vmul.f32 %v534, %v530
        %v539 = vmul.f32 %v535, %v531
        %v540 = vmul.f32 %v536, %v532
        %v541 = vmul.f32 %v537, %v533
        %v542 = vlog2.pop %v526
        %v543 = vmul.f32 %v542, 0.6931472
        %v544 = vlog2.pop %v527
        %v545 = vmul.f32 %v544, 0.6931472
        %v546 = vlog2.pop %v528
        %v547 = vmul.f32 %v546, 0.6931472
        %v548 = vlog2.pop %v529
        %v549 = vmul.f32 %v548, 0.6931472
        %v550 = vadd.f32 %v538, %v543
        %v551 = vadd.f32 %v539, %v545
        %v552 = vadd.f32 %v540, %v547
        %v553 = vadd.f32 %v541, %v549
        %v554 = vld [vmem:[%s330] sm:$0xff]
        %v555 = vmax.f32 %v554, 0.0
        %v556 = vmin.f32 %v555, 1.0
        %v557 = vsub.f32 1.0, %v556
        %v558 = vld [vmem:[%s5] sm:$0xff]
        %v559 = vld [vmem:[%s5 + $0x8] sm:$0xff]
        %v560 = vld [vmem:[%s5 + $0x10] sm:$0xff]
        %v561 = vld [vmem:[%s5 + $0x18] sm:$0xff]
        %vm562 = vcmask 64512
        %v564 = vsel %vm562, %v557, 0
        %566 = vmatprep.subr.mxu0 0.0
        %567 = vmatpush1.msra.mxu0 0.0
        %568 = vmatprep.subr.mxu0 0.0
        %569 = vmatpush1.msra.mxu0 0.0
        %570 = vmatprep.subr.mxu0 0.0
        %571 = vmatpush1.msra.mxu0 0.0
        %572 = vmatprep.subr.mxu0 0.0
        %573 = vmatpush1.msra.mxu0 0.0
        %574 = vmatprep.subr.mxu0 0.0
        %575 = vmatpush1.msra.mxu0 0.0
        %576 = vmatprep.subr.mxu0 0.0
        %577 = vmatpush1.msra.mxu0 0.0
        %578 = vmatprep.subr.mxu0 0.0
        %579 = vmatpush1.msra.mxu0 0.0
        %580 = vmatprep.subr.mxu0 0.0
        %581 = vmatpush1.msra.mxu0 0.0
        %582 = vmatprep.subr.mxu0 0.0
        %583 = vmatpush1.msra.mxu0 0.0
        %584 = vmatprep.subr.mxu0 0.0
        %585 = vmatpush1.msra.mxu0 0.0
        %586 = vmatprep.subr.mxu0 0.0
        %587 = vmatpush1.msra.mxu0 0.0
        %588 = vmatprep.subr.mxu0 0.0
        %589 = vmatpush1.msra.mxu0 0.0
        %590 = vmatprep.subr.mxu0 0.0
        %591 = vmatpush1.msra.mxu0 0.0
        %592 = vmatprep.subr.mxu0 0.0
        %593 = vmatpush1.msra.mxu0 0.0
        %594 = vmatprep.subr.mxu0 0.0
        %595 = vmatpush1.msra.mxu0 0.0
        %596 = vmatprep.subr.mxu0 %v559
        %597 = vmatpush1.msra.mxu0 %v558
        %598 = vmatprep.subr.mxu0 0.0
        %599 = vmatpush2.msra.mxu0 0.0
        %600 = vmatprep.subr.mxu0 0.0
        %601 = vmatpush2.msra.mxu0 0.0
        %602 = vmatprep.subr.mxu0 0.0
        %603 = vmatpush2.msra.mxu0 0.0
        %604 = vmatprep.subr.mxu0 0.0
        %605 = vmatpush2.msra.mxu0 0.0
        %606 = vmatprep.subr.mxu0 0.0
        %607 = vmatpush2.msra.mxu0 0.0
        %608 = vmatprep.subr.mxu0 0.0
        %609 = vmatpush2.msra.mxu0 0.0
        %610 = vmatprep.subr.mxu0 0.0
        %611 = vmatpush2.msra.mxu0 0.0
        %612 = vmatprep.subr.mxu0 0.0
        %613 = vmatpush2.msra.mxu0 0.0
        %614 = vmatprep.subr.mxu0 0.0
        %615 = vmatpush2.msra.mxu0 0.0
        %616 = vmatprep.subr.mxu0 0.0
        %617 = vmatpush2.msra.mxu0 0.0
        %618 = vmatprep.subr.mxu0 0.0
        %619 = vmatpush2.msra.mxu0 0.0
        %620 = vmatprep.subr.mxu0 0.0
        %621 = vmatpush2.msra.mxu0 0.0
        %622 = vmatprep.subr.mxu0 0.0
        %623 = vmatpush2.msra.mxu0 0.0
        %624 = vmatprep.subr.mxu0 0.0
        %625 = vmatpush2.msra.mxu0 0.0
        %626 = vmatprep.subr.mxu0 0.0
        %627 = vmatpush2.msra.mxu0 0.0
        %628 = vmatprep.subr.mxu0 0.0
        %629 = vmatpush2.msra.mxu0 0.0
        %630 = vmatprep.mubr.f32.mxu0 0.0
        %631 = vmatmul.mubr.f32.gmra.mxu0 %v564
        %v632 = vpop.f32.mrf.mxu0
        %v633 = vadd.f32 0.0, %v632
        %v634 = vpop.f32.mrf.mxu0
        %v635 = vadd.f32 0.0, %v634
        %636 = vdwg.mxu0
        %637 = vmatprep.subr.mxu0 0.0
        %638 = vmatpush1.msra.mxu0 0.0
        %639 = vmatprep.subr.mxu0 0.0
        %640 = vmatpush1.msra.mxu0 0.0
        %641 = vmatprep.subr.mxu0 0.0
        %642 = vmatpush1.msra.mxu0 0.0
        %643 = vmatprep.subr.mxu0 0.0
        %644 = vmatpush1.msra.mxu0 0.0
        %645 = vmatprep.subr.mxu0 0.0
        %646 = vmatpush1.msra.mxu0 0.0
        %647 = vmatprep.subr.mxu0 0.0
        %648 = vmatpush1.msra.mxu0 0.0
        %649 = vmatprep.subr.mxu0 0.0
        %650 = vmatpush1.msra.mxu0 0.0
        %651 = vmatprep.subr.mxu0 0.0
        %652 = vmatpush1.msra.mxu0 0.0
        %653 = vmatprep.subr.mxu0 0.0
        %654 = vmatpush1.msra.mxu0 0.0
        %655 = vmatprep.subr.mxu0 0.0
        %656 = vmatpush1.msra.mxu0 0.0
        %657 = vmatprep.subr.mxu0 0.0
        %658 = vmatpush1.msra.mxu0 0.0
        %659 = vmatprep.subr.mxu0 0.0
        %660 = vmatpush1.msra.mxu0 0.0
        %661 = vmatprep.subr.mxu0 0.0
        %662 = vmatpush1.msra.mxu0 0.0
        %663 = vmatprep.subr.mxu0 0.0
        %664 = vmatpush1.msra.mxu0 0.0
        %665 = vmatprep.subr.mxu0 0.0
        %666 = vmatpush1.msra.mxu0 0.0
        %667 = vmatprep.subr.mxu0 %v561
        %668 = vmatpush1.msra.mxu0 %v560
        %669 = vmatprep.subr.mxu0 0.0
        %670 = vmatpush2.msra.mxu0 0.0
        %671 = vmatprep.subr.mxu0 0.0
        %672 = vmatpush2.msra.mxu0 0.0
        %673 = vmatprep.subr.mxu0 0.0
        %674 = vmatpush2.msra.mxu0 0.0
        %675 = vmatprep.subr.mxu0 0.0
        %676 = vmatpush2.msra.mxu0 0.0
        %677 = vmatprep.subr.mxu0 0.0
        %678 = vmatpush2.msra.mxu0 0.0
        %679 = vmatprep.subr.mxu0 0.0
        %680 = vmatpush2.msra.mxu0 0.0
        %681 = vmatprep.subr.mxu0 0.0
        %682 = vmatpush2.msra.mxu0 0.0
        %683 = vmatprep.subr.mxu0 0.0
        %684 = vmatpush2.msra.mxu0 0.0
        %685 = vmatprep.subr.mxu0 0.0
        %686 = vmatpush2.msra.mxu0 0.0
        %687 = vmatprep.subr.mxu0 0.0
        %688 = vmatpush2.msra.mxu0 0.0
        %689 = vmatprep.subr.mxu0 0.0
        %690 = vmatpush2.msra.mxu0 0.0
        %691 = vmatprep.subr.mxu0 0.0
        %692 = vmatpush2.msra.mxu0 0.0
        %693 = vmatprep.subr.mxu0 0.0
        %694 = vmatpush2.msra.mxu0 0.0
        %695 = vmatprep.subr.mxu0 0.0
        %696 = vmatpush2.msra.mxu0 0.0
        %697 = vmatprep.subr.mxu0 0.0
        %698 = vmatpush2.msra.mxu0 0.0
        %699 = vmatprep.subr.mxu0 0.0
        %700 = vmatpush2.msra.mxu0 0.0
        %701 = vmatprep.mubr.f32.mxu0 0.0
        %702 = vmatmul.mubr.f32.gmra.mxu0 %v564
        %v703 = vpop.f32.mrf.mxu0
        %v704 = vadd.f32 0.0, %v703
        %v705 = vpop.f32.mrf.mxu0
        %v706 = vadd.f32 0.0, %v705
        %707 = vdwg.mxu0
        %v708 = vmul.f32 %v550, %v633
        %v709 = vmul.f32 %v551, %v635
        %v710 = vmul.f32 %v552, %v704
        %v711 = vmul.f32 %v553, %v706
        %v712 = vsel %vm562, %v557, 0.0
        %713 = vadd.xlane.f32.xlu0 %v712
        %v714 = vpop.xlane.xlu0 %713
        %v715 = vmul.f32 %v714, -1.837877
        %v716 = vld [vmem:[%s1] sm:$0xff]
        %v717 = vld [vmem:[%s1 + $0x8] sm:$0xff]
        %v718 = vld [vmem:[%s1 + $0x10] sm:$0xff]
        %v719 = vld [vmem:[%s1 + $0x18] sm:$0xff]
        %v720 = vld [vmem:[%s1 + $0x20] sm:$0xff]
        %v721 = vld [vmem:[%s1 + $0x28] sm:$0xff]
        %v722 = vld [vmem:[%s1 + $0x30] sm:$0xff]
        %v723 = vld [vmem:[%s1 + $0x38] sm:$0xff]
        %v724 = vld [vmem:[%s1 + $0x40] sm:$0xff]
        %v725 = vld [vmem:[%s1 + $0x48] sm:$0xff]
        %v726 = vld [vmem:[%s1 + $0x50] sm:$0xff]
        %v727 = vld [vmem:[%s1 + $0x58] sm:$0xff]
        %v728 = vld [vmem:[%s1 + $0x60] sm:$0xff]
        %v729 = vld [vmem:[%s1 + $0x68] sm:$0xff]
        %v730 = vld [vmem:[%s1 + $0x70] sm:$0xff]
        %v731 = vld [vmem:[%s1 + $0x78] sm:$0xff]
        %v732 = vld [vmem:[%s1 + $0x80] sm:$0xff]
        %v733 = vld [vmem:[%s1 + $0x88] sm:$0xff]
        %v734 = vld [vmem:[%s1 + $0x90] sm:$0xff]
        %v735 = vld [vmem:[%s1 + $0x98] sm:$0xff]
        %v736 = vld [vmem:[%s1 + $0xa0] sm:$0xff]
        %v737 = vld [vmem:[%s1 + $0xa8] sm:$0xff]
        %v738 = vld [vmem:[%s1 + $0xb0] sm:$0xff]
        %v739 = vld [vmem:[%s1 + $0xb8] sm:$0xff]
        %v740 = vld [vmem:[%s1 + $0xc0] sm:$0xff]
        %v741 = vld [vmem:[%s1 + $0xc8] sm:$0xff]
        %v742 = vld [vmem:[%s1 + $0xd0] sm:$0xff]
        %v743 = vld [vmem:[%s1 + $0xd8] sm:$0xff]
        %v744 = vld [vmem:[%s1 + $0xe0] sm:$0xff]
        %v745 = vld [vmem:[%s1 + $0xe8] sm:$0xff]
        %v746 = vld [vmem:[%s1 + $0xf0] sm:$0xff]
        %v747 = vld [vmem:[%s1 + $0xf8] sm:$0xff]
        %v748 = vld [vmem:[%s1 + $0x100] sm:$0xff]
        %v749 = vld [vmem:[%s1 + $0x108] sm:$0xff]
        %v750 = vld [vmem:[%s1 + $0x110] sm:$0xff]
        %v751 = vld [vmem:[%s1 + $0x118] sm:$0xff]
        %v752 = vld [vmem:[%s1 + $0x120] sm:$0xff]
        %v753 = vld [vmem:[%s1 + $0x128] sm:$0xff]
        %v754 = vld [vmem:[%s1 + $0x130] sm:$0xff]
        %v755 = vld [vmem:[%s1 + $0x138] sm:$0xff]
        %v756 = vld [vmem:[%s1 + $0x140] sm:$0xff]
        %v757 = vld [vmem:[%s1 + $0x148] sm:$0xff]
        %v758 = vld [vmem:[%s1 + $0x150] sm:$0xff]
        %v759 = vld [vmem:[%s1 + $0x158] sm:$0xff]
        %v760 = vld [vmem:[%s1 + $0x160] sm:$0xff]
        %v761 = vld [vmem:[%s1 + $0x168] sm:$0xff]
        %v762 = vld [vmem:[%s1 + $0x170] sm:$0xff]
        %v763 = vld [vmem:[%s1 + $0x178] sm:$0xff]
        %v764 = vld [vmem:[%s1 + $0x180] sm:$0xff]
        %v765 = vld [vmem:[%s1 + $0x188] sm:$0xff]
        %v766 = vld [vmem:[%s1 + $0x190] sm:$0xff]
        %v767 = vld [vmem:[%s1 + $0x198] sm:$0xff]
        %v768 = vld [vmem:[%s1 + $0x1a0] sm:$0xff]
        %v769 = vld [vmem:[%s1 + $0x1a8] sm:$0xff]
        %v770 = vld [vmem:[%s1 + $0x1b0] sm:$0xff]
        %v771 = vld [vmem:[%s1 + $0x1b8] sm:$0xff]
        %v772 = vld [vmem:[%s1 + $0x1c0] sm:$0xff]
        %v773 = vld [vmem:[%s1 + $0x1c8] sm:$0xff]
        %v774 = vld [vmem:[%s1 + $0x1d0] sm:$0xff]
        %v775 = vld [vmem:[%s1 + $0x1d8] sm:$0xff]
        %v776 = vld [vmem:[%s1 + $0x1e0] sm:$0xff]
        %v777 = vld [vmem:[%s1 + $0x1e8] sm:$0xff]
        %v778 = vld [vmem:[%s1 + $0x1f0] sm:$0xff]
        %v779 = vld [vmem:[%s1 + $0x1f8] sm:$0xff]
        %780 = vmatprep.subr.mxu0 0.0
        %781 = vmatpush1.msra.mxu0 %v731
        %782 = vmatprep.subr.mxu0 0.0
        %783 = vmatpush1.msra.mxu0 %v730
        %784 = vmatprep.subr.mxu0 0.0
        %785 = vmatpush1.msra.mxu0 %v729
        %786 = vmatprep.subr.mxu0 0.0
        %787 = vmatpush1.msra.mxu0 %v728
        %788 = vmatprep.subr.mxu0 0.0
        %789 = vmatpush1.msra.mxu0 %v727
        %790 = vmatprep.subr.mxu0 0.0
        %791 = vmatpush1.msra.mxu0 %v726
        %792 = vmatprep.subr.mxu0 0.0
        %793 = vmatpush1.msra.mxu0 %v725
        %794 = vmatprep.subr.mxu0 0.0
        %795 = vmatpush1.msra.mxu0 %v724
        %796 = vmatprep.subr.mxu0 0.0
        %797 = vmatpush1.msra.mxu0 %v723
        %798 = vmatprep.subr.mxu0 0.0
        %799 = vmatpush1.msra.mxu0 %v722
        %800 = vmatprep.subr.mxu0 0.0
        %801 = vmatpush1.msra.mxu0 %v721
        %802 = vmatprep.subr.mxu0 0.0
        %803 = vmatpush1.msra.mxu0 %v720
        %804 = vmatprep.subr.mxu0 0.0
        %805 = vmatpush1.msra.mxu0 %v719
        %806 = vmatprep.subr.mxu0 0.0
        %807 = vmatpush1.msra.mxu0 %v718
        %808 = vmatprep.subr.mxu0 0.0
        %809 = vmatpush1.msra.mxu0 %v717
        %810 = vmatprep.subr.mxu0 0.0
        %811 = vmatpush1.msra.mxu0 %v716
        %812 = vmatprep.subr.mxu0 0.0
        %813 = vmatpush2.msra.mxu0 %v747
        %814 = vmatprep.subr.mxu0 0.0
        %815 = vmatpush2.msra.mxu0 %v746
        %816 = vmatprep.subr.mxu0 0.0
        %817 = vmatpush2.msra.mxu0 %v745
        %818 = vmatprep.subr.mxu0 0.0
        %819 = vmatpush2.msra.mxu0 %v744
        %820 = vmatprep.subr.mxu0 0.0
        %821 = vmatpush2.msra.mxu0 %v743
        %822 = vmatprep.subr.mxu0 0.0
        %823 = vmatpush2.msra.mxu0 %v742
        %824 = vmatprep.subr.mxu0 0.0
        %825 = vmatpush2.msra.mxu0 %v741
        %826 = vmatprep.subr.mxu0 0.0
        %827 = vmatpush2.msra.mxu0 %v740
        %828 = vmatprep.subr.mxu0 0.0
        %829 = vmatpush2.msra.mxu0 %v739
        %830 = vmatprep.subr.mxu0 0.0
        %831 = vmatpush2.msra.mxu0 %v738
        %832 = vmatprep.subr.mxu0 0.0
        %833 = vmatpush2.msra.mxu0 %v737
        %834 = vmatprep.subr.mxu0 0.0
        %835 = vmatpush2.msra.mxu0 %v736
        %836 = vmatprep.subr.mxu0 0.0
        %837 = vmatpush2.msra.mxu0 %v735
        %838 = vmatprep.subr.mxu0 0.0
        %839 = vmatpush2.msra.mxu0 %v734
        %840 = vmatprep.subr.mxu0 0.0
        %841 = vmatpush2.msra.mxu0 %v733
        %842 = vmatprep.subr.mxu0 0.0
        %843 = vmatpush2.msra.mxu0 %v732
        %844 = vmatprep.mubr.f32.mxu0 %v709
        %845 = vmatmul.mubr.f32.gmra.mxu0 %v708
        %v846 = vpop.f32.mrf.mxu0
        %v847 = vadd.f32 %v715, %v846
        %v848 = vpop.f32.mrf.mxu0
        %849 = vdwg.mxu0
        %850 = vmatprep.subr.mxu0 0.0
        %851 = vmatpush1.msra.mxu0 %v763
        %852 = vmatprep.subr.mxu0 0.0
        %853 = vmatpush1.msra.mxu0 %v762
        %854 = vmatprep.subr.mxu0 0.0
        %855 = vmatpush1.msra.mxu0 %v761
        %856 = vmatprep.subr.mxu0 0.0
        %857 = vmatpush1.msra.mxu0 %v760
        %858 = vmatprep.subr.mxu0 0.0
        %859 = vmatpush1.msra.mxu0 %v759
        %860 = vmatprep.subr.mxu0 0.0
        %861 = vmatpush1.msra.mxu0 %v758
        %862 = vmatprep.subr.mxu0 0.0
        %863 = vmatpush1.msra.mxu0 %v757
        %864 = vmatprep.subr.mxu0 0.0
        %865 = vmatpush1.msra.mxu0 %v756
        %866 = vmatprep.subr.mxu0 0.0
        %867 = vmatpush1.msra.mxu0 %v755
        %868 = vmatprep.subr.mxu0 0.0
        %869 = vmatpush1.msra.mxu0 %v754
        %870 = vmatprep.subr.mxu0 0.0
        %871 = vmatpush1.msra.mxu0 %v753
        %872 = vmatprep.subr.mxu0 0.0
        %873 = vmatpush1.msra.mxu0 %v752
        %874 = vmatprep.subr.mxu0 0.0
        %875 = vmatpush1.msra.mxu0 %v751
        %876 = vmatprep.subr.mxu0 0.0
        %877 = vmatpush1.msra.mxu0 %v750
        %878 = vmatprep.subr.mxu0 0.0
        %879 = vmatpush1.msra.mxu0 %v749
        %880 = vmatprep.subr.mxu0 0.0
        %881 = vmatpush1.msra.mxu0 %v748
        %882 = vmatprep.subr.mxu0 0.0
        %883 = vmatpush2.msra.mxu0 %v779
        %884 = vmatprep.subr.mxu0 0.0
        %885 = vmatpush2.msra.mxu0 %v778
        %886 = vmatprep.subr.mxu0 0.0
        %887 = vmatpush2.msra.mxu0 %v777
        %888 = vmatprep.subr.mxu0 0.0
        %889 = vmatpush2.msra.mxu0 %v776
        %890 = vmatprep.subr.mxu0 0.0
        %891 = vmatpush2.msra.mxu0 %v775
        %892 = vmatprep.subr.mxu0 0.0
        %893 = vmatpush2.msra.mxu0 %v774
        %894 = vmatprep.subr.mxu0 0.0
        %895 = vmatpush2.msra.mxu0 %v773
        %896 = vmatprep.subr.mxu0 0.0
        %897 = vmatpush2.msra.mxu0 %v772
        %898 = vmatprep.subr.mxu0 0.0
        %899 = vmatpush2.msra.mxu0 %v771
        %900 = vmatprep.subr.mxu0 0.0
        %901 = vmatpush2.msra.mxu0 %v770
        %902 = vmatprep.subr.mxu0 0.0
        %903 = vmatpush2.msra.mxu0 %v769
        %904 = vmatprep.subr.mxu0 0.0
        %905 = vmatpush2.msra.mxu0 %v768
        %906 = vmatprep.subr.mxu0 0.0
        %907 = vmatpush2.msra.mxu0 %v767
        %908 = vmatprep.subr.mxu0 0.0
        %909 = vmatpush2.msra.mxu0 %v766
        %910 = vmatprep.subr.mxu0 0.0
        %911 = vmatpush2.msra.mxu0 %v765
        %912 = vmatprep.subr.mxu0 0.0
        %913 = vmatpush2.msra.mxu0 %v764
        %914 = vmatprep.mubr.f32.mxu0 %v711
        %915 = vmatmul.mubr.f32.gmra.mxu0 %v710
        %v916 = vpop.f32.mrf.mxu0
        %v917 = vadd.f32 %v847, %v916
        %v918 = vpop.f32.mrf.mxu0
        %919 = vdwg.mxu0
        %vm920 = vcmask 261120
        %921 = vst.msk [vmem:[%s312] sm:$0xff] %vm920, %v917
        %s922 = sand.u32 %s196, 1
        %s923 = scalar_lea.sflag [#allocation3], %s922
        %s924 = sand.u32 %s196, 1
        %s925 = smul.addr %s924, 8
        %s926 = scalar_lea.vmem [#allocation2], %s925
        // Predicated region
        $region49: #{tpu_custom_call.1} parent=47 // pred_check
          %p927 = pneg %p206
        $region50: #{tpu_custom_call.1} parent=47 // pred_check_branch
          %929 = sbr.rel (%p927) target = $region52
        $region51: #{tpu_custom_call.1} parent=47 // pred_region
          %s931 = ssub.s32 128, 128
          %932 = vsyncadd %s923, %s931
          %s933 = smul.addr %s21, 128
          %s934 = scalar_lea.hbm %s7, %s933
          %s936 = sshll.u32 %s926, 4
          %s937 = int_to_ptr.vmem [resolvable:$true] %s936
          %939 = dma.vmem_to_hbm [thread:$0]  %s937, 128, %s934, %s923
        $region52: #{tpu_custom_call.1} parent=47 // pred_fallthru
          _
      $region48: #{tpu_custom_call.1} parent=5 // pred_fallthru
        _
      %p940 = scmp.le.s32.totalorder 2, %s16
      // Predicated region
      $region53: #{tpu_custom_call.1} parent=5 // pred_check
        %p941 = pneg %p940
      $region54: #{tpu_custom_call.1} parent=5 // pred_check_branch
        %943 = sbr.rel (%p941) target = $region56
      $region55: #{tpu_custom_call.1} parent=5 // pred_region
        %s944 = ssub.s32 %s16, 2
        // Predicated region
        $region57: #{tpu_custom_call.1} parent=55 // pred_check
          %p945 = pneg %p212
        $region58: #{tpu_custom_call.1} parent=55 // pred_check_branch
          %947 = sbr.rel (%p945) target = $region60
        $region59: #{tpu_custom_call.1} parent=55 // pred_region
          %s948 = sand.u32 %s197, 1
          %s949 = scalar_lea.sflag [#allocation3], %s948
          %s950 = sand.u32 %s197, 1
          %s951 = smul.addr %s950, 8
          %s952 = scalar_lea.vmem [#allocation2], %s951
          %953 = dma.done %s949, 128
        $region60: #{tpu_custom_call.1} parent=55 // pred_fallthru
          _
      $region56: #{tpu_custom_call.1} parent=5 // pred_fallthru
        _
    $region6: #{tpu_custom_call.1} parent=1 // loop_footer
      %s20 = sadd.s32 1, %s16
    $region7: #{tpu_custom_call.1} parent=1 // loop_footer_branch
      %15 = sbr.rel target = $region3
    $region8: #{tpu_custom_call.1} parent=1 // loop_exit
      _
    %954 = vsyncpa [#allocation3], 1
    %s955 = scalar_lea.sflag [#allocation3], 1
    %956 = vsyncpa %s955, 1

</llo_original>
